<compile_context>
chip_gen: v7x
topology: tpu7x:2x2x1
jax: 0.10.0
libtpu: 0.0.40
codegen_flags: <defaults>
</compile_context>

<pallas_src>
import functools
import math

import jax
import jax.numpy as jnp
from jax import lax
from jax.experimental import pallas as pl
from jax.experimental.pallas import tpu as pltpu


def _round_up(x, m):
    return ((x + m - 1) // m) * m


def _resident_table_spec(V, D):
    """BlockSpec for the resident table (same block index every grid step).

    Single-buffer it when the installed Pallas supports pipeline_mode (halves
    the resident VMEM footprint); otherwise fall back to the default spec.
    """
    idx = lambda i: (0, 0)
    try:
        return pl.BlockSpec((V, D), idx, pipeline_mode=pl.Buffered(1))
    except TypeError:  # older BlockSpec without pipeline_mode
        return pl.BlockSpec((V, D), idx)


# --------------------------------------------------------------------------
# Path A: small vocab -> table resident in VMEM, on-chip one-hot MXU gather.
# --------------------------------------------------------------------------
def _embed_resident_kernel(ids_ref, table_ref, out_ref, *, scale):
    # ids_ref:   (T, 1) int32   token ids for this block
    # table_ref: (V, D) table dtype (resident: same block every grid step)
    # out_ref:   (T, D) output dtype
    V = table_ref.shape[0]
    T = ids_ref.shape[0]
    ids = jnp.minimum(jnp.maximum(ids_ref[...], 0), V - 1)        # clamp OOB ids
    vocab_iota = lax.broadcasted_iota(jnp.int32, (T, V), 1)       # (T, V)
    onehot = (ids == vocab_iota).astype(table_ref.dtype)          # 0/1: exact in bf16
    gathered = jnp.dot(onehot, table_ref[...],
                       preferred_element_type=jnp.float32)        # (T, D) on MXU
    out_ref[...] = (gathered * scale).astype(out_ref.dtype)


def _embedding_resident(flat_ids_padded, table, out_dtype, block_tokens, scale):
    n_pad = flat_ids_padded.shape[0]
    V, D = table.shape
    n_blocks = n_pad // block_tokens
    ids_col = flat_ids_padded.reshape(n_pad, 1)

    itemsize = table.dtype.itemsize
    vmem_bytes = (2 * V * D * itemsize            # table (worst case: double-buffered)
                  + 2 * block_tokens * 128 * 4    # ids blocks (lane-padded), x2 buffers
                  + 3 * block_tokens * D * 4      # output blocks (x2) + matmul result
                  + 2 * block_tokens * V * 4      # (T,V) iota + one-hot intermediates
                  + (4 << 20))                    # headroom
    return pl.pallas_call(
        functools.partial(_embed_resident_kernel, scale=scale),
        out_shape=jax.ShapeDtypeStruct((n_pad, D), out_dtype),
        grid=(n_blocks,),
        in_specs=[
            pl.BlockSpec((block_tokens, 1), lambda i: (i, 0)),
            _resident_table_spec(V, D),            # DMA'd once, stays in VMEM
        ],
        out_specs=pl.BlockSpec((block_tokens, D), lambda i: (i, 0)),
        compiler_params=pltpu.CompilerParams(
            dimension_semantics=("parallel",),
            vmem_limit_bytes=int(max(vmem_bytes, 16 << 20)),
        ),
    )(ids_col, table)


# --------------------------------------------------------------------------
# Path B: general vocab -> table in HBM, manual row-gather DMAs landing
#         directly in the output block, sliding window of n_inflight copies.
# --------------------------------------------------------------------------
def _embed_dma_gather_kernel(ids_ref, table_hbm, out_ref, sems, *,
                             scale, block_tokens, vocab_size, n_inflight):
    # ids_ref:   (T,) int32 in SMEM (this block's token ids)
    # table_hbm: (V, D) ref left in HBM (memory_space=pl.ANY)
    # out_ref:   (T, D) output block in VMEM (gather DMAs land here directly)
    # sems:      (n_inflight,) DMA semaphores (sliding window of row copies)

    def clamp(tok):
        return jnp.minimum(jnp.maximum(tok, 0), vocab_size - 1)   # clamp OOB ids

    def start_row_copy(row, tok, slot):
        pltpu.make_async_copy(
            table_hbm.at[pl.ds(tok, 1), :],
            out_ref.at[pl.ds(row, 1), :],
            sems.at[slot],
        ).start()

    def wait_row_copy(slot):
        # Descriptor only has to match the transferred size: one (1, D) row of
        # the same dtype as the started copy.  (Reconstructing the exact source
        # offset would require remembering the token id per slot.)
        pltpu.make_async_copy(
            table_hbm.at[pl.ds(0, 1), :],
            out_ref.at[pl.ds(0, 1), :],
            sems.at[slot],
        ).wait()

    # Prime the window: n_inflight outstanding row DMAs.
    @pl.loop(0, n_inflight)
    def _(t):
        start_row_copy(t, clamp(ids_ref[t]), t)

    # Steady state: pre-read the refill token id *before* the wait (DMA waits
    # break SMEM sst->sld forwarding), retire copy t, refill its slot with copy
    # t + n_inflight, keeping n_inflight row DMAs in flight.
    @pl.loop(0, block_tokens)
    def _(t):
        nxt = t + n_inflight
        refill_tok = clamp(ids_ref[jnp.minimum(nxt, block_tokens - 1)])
        slot = t % n_inflight
        wait_row_copy(slot)

        @pl.when(nxt < block_tokens)
        def _():
            start_row_copy(nxt, refill_tok, slot)

    # One dense in-place (T, D) scale pass; the block writeback DMA follows.
    out_ref[...] = out_ref[...] * scale


def _embedding_dma_gather(flat_ids_padded, table, out_dtype, block_tokens, scale,
                          n_inflight):
    n_pad = flat_ids_padded.shape[0]
    V, D = table.shape
    n_blocks = n_pad // block_tokens
    n_inflight = max(1, min(n_inflight, block_tokens))

    vmem_bytes = (2 * block_tokens * D * 4        # double-buffered output blocks
                  + (4 << 20))                    # headroom
    return pl.pallas_call(
        functools.partial(_embed_dma_gather_kernel, scale=scale,
                          block_tokens=block_tokens, vocab_size=V,
                          n_inflight=n_inflight),
        out_shape=jax.ShapeDtypeStruct((n_pad, D), out_dtype),
        grid=(n_blocks,),
        in_specs=[
            # Per-block token ids land in SMEM (bounded SMEM use at any n_tok).
            pl.BlockSpec((block_tokens,), lambda i: (i,),
                         memory_space=pltpu.MemorySpace.SMEM),
            # Embedding table stays in HBM; rows are gathered with manual DMAs.
            pl.BlockSpec(memory_space=pl.ANY),
        ],
        out_specs=pl.BlockSpec((block_tokens, D), lambda i: (i, 0)),
        scratch_shapes=[pltpu.SemaphoreType.DMA((n_inflight,))],
        compiler_params=pltpu.CompilerParams(
            dimension_semantics=("parallel",),
            vmem_limit_bytes=int(max(vmem_bytes, 16 << 20)),
        ),
    )(flat_ids_padded, table)


# --------------------------------------------------------------------------
# Public wrapper: forward(X) = embed[X] * sqrt(embed_dim)
# --------------------------------------------------------------------------
def embedding_layer_forward(token_ids, embed_table, *, block_tokens=None,
                            force_dma_gather=False, n_inflight=32,
                            resident_max_vocab=1024,
                            resident_max_table_bytes=8 << 20,
                            resident_bf16_table=False):
    """token_ids: int (B, S); embed_table: (V, D) -> (B, S, D) scaled embeddings."""
    B, S = token_ids.shape
    V, D = embed_table.shape
    scale = math.sqrt(float(D))  # torch.sqrt(FloatTensor([embed_dim]))

    n_tok = B * S
    flat_ids = token_ids.reshape(-1).astype(jnp.int32)

    # Resident-path gate: V cap bounds the MXU one-hot cost (critical on v5e's
    # weaker MXU); byte cap keeps even a double-buffered table inside v7x's
    # 64 MiB-per-TC VMEM with pipeline headroom.
    table_bytes = V * D * embed_table.dtype.itemsize
    use_resident = ((not force_dma_gather)
                    and V <= resident_max_vocab
                    and table_bytes <= resident_max_table_bytes)

    # Token block: multiple of 8 (f32 sublanes).  Path B defaults to larger
    # blocks to amortize the DMA-window prime/drain bubble and grid overhead.
    if block_tokens is None:
        block_tokens = 256 if use_resident else 512
    T = min(block_tokens, _round_up(n_tok, 8))
    T = _round_up(T, 8)
    n_pad = _round_up(n_tok, T)
    if n_pad != n_tok:
        flat_ids = jnp.pad(flat_ids, (0, n_pad - n_tok))   # pad with id 0 (valid row)

    out_dtype = embed_table.dtype
    if use_resident:
        # Optional bf16 table for native-bf16 MXU (one-hot is exact; table values
        # round to bf16 -> numerics change, so this is opt-in).
        table = embed_table.astype(jnp.bfloat16) if resident_bf16_table else embed_table
        out_flat = _embedding_resident(flat_ids, table, out_dtype, T, scale)
    else:
        out_flat = _embedding_dma_gather(flat_ids, embed_table, out_dtype, T,
                                         scale, n_inflight)

    return out_flat[:n_tok].reshape(B, S, D)


if __name__ == "__main__":
    # Small, deterministic synthetic setup consistent with the module.
    vocab_size = 64
    embed_dim = 256       # module default embed_dim
    batch, seq = 2, 8

    key = jax.random.PRNGKey(0)
    k_emb, k_ids = jax.random.split(key)

    embed_table = jax.random.normal(k_emb, (vocab_size, embed_dim), dtype=jnp.float32)
    token_ids = jax.random.randint(k_ids, (batch, seq), 0, vocab_size, dtype=jnp.int32)

    # Reference (plain JAX gather + scale).
    ref = embed_table[token_ids] * math.sqrt(float(embed_dim))

    # Path A: VMEM-resident (single-buffered) table + one-hot MXU gather.
    out_a = jax.block_until_ready(embedding_layer_forward(token_ids, embed_table))
    assert out_a.shape == (batch, seq, embed_dim)
    assert jnp.allclose(out_a, ref, atol=1e-5, rtol=1e-5)

    # Path B: HBM table + sliding-window row-gather DMAs straight into the output.
    out_b = jax.block_until_ready(
        embedding_layer_forward(token_ids, embed_table, force_dma_gather=True))
    assert out_b.shape == (batch, seq, embed_dim)
    assert jnp.allclose(out_b, ref, atol=1e-5, rtol=1e-5)

    print("KERNEL_OK")
</pallas_src>

<mosaic_0001>
module attributes {stable_mosaic.version = 11 : i64} {
  func.func @_embed_resident_kernel(%arg0: i32, %arg1: memref<16x1xi32, #tpu.memory_space<vmem>>, %arg2: memref<64x256xf32, #tpu.memory_space<vmem>>, %arg3: memref<16x256xf32, #tpu.memory_space<vmem>>) attributes {dimension_semantics = [#tpu.dimension_semantics<parallel>], iteration_bounds = array<i64: 1>, scalar_prefetch = 0 : i64, scratch_operands = 0 : i64, tpu.core_type = #tpu.core_type<tc>, window_params = [{transform_indices = @transform_0, window_bounds = array<i64: 16, 1>}, {pipeline_mode = #tpu.pipeline_mode<synchronous>, transform_indices = @transform_1, window_bounds = array<i64: 64, 256>}, {transform_indices = @transform_2, window_bounds = array<i64: 16, 256>}]} {
    %c0 = arith.constant 0 : index
    %c0_0 = arith.constant 0 : index
    %0 = vector.load %arg1[%c0, %c0_0] : memref<16x1xi32, #tpu.memory_space<vmem>>, vector<16x1xi32>
    %c0_i32 = arith.constant 0 : i32
    %1 = vector.broadcast %c0_i32 : i32 to vector<16x1xi32>
    %2 = arith.maxsi %0, %1 : vector<16x1xi32>
    %c63_i32 = arith.constant 63 : i32
    %3 = vector.broadcast %c63_i32 : i32 to vector<16x1xi32>
    %4 = arith.minsi %2, %3 : vector<16x1xi32>
    %5 = tpu.iota {dimensions = array<i32: 1>} : vector<16x64xi32>
    %6 = vector.broadcast %4 : vector<16x1xi32> to vector<16x64xi32>
    %7 = arith.cmpi eq, %6, %5 : vector<16x64xi32>
    %8 = arith.extui %7 : vector<16x64xi1> to vector<16x64xi32>
    %9 = arith.sitofp %8 : vector<16x64xi32> to vector<16x64xf32>
    %c0_1 = arith.constant 0 : index
    %c0_2 = arith.constant 0 : index
    %10 = vector.load %arg2[%c0_1, %c0_2] : memref<64x256xf32, #tpu.memory_space<vmem>>, vector<64x256xf32>
    %cst = arith.constant dense<0.000000e+00> : vector<16x256xf32>
    %11 = tpu.matmul %9, %10, %cst {dimension_numbers = #tpu.dot_dimension_numbers<[1], [0], [0], [1], [0, 0, 1, 1], [], []>} : vector<16x64xf32>, vector<64x256xf32>, vector<16x256xf32> -> vector<16x256xf32>
    %cst_3 = arith.constant 1.600000e+01 : f32
    %12 = vector.broadcast %cst_3 : f32 to vector<16x256xf32>
    %13 = arith.mulf %11, %12 : vector<16x256xf32>
    %c0_4 = arith.constant 0 : index
    %c0_5 = arith.constant 0 : index
    %14 = vector.load %arg3[%c0_4, %c0_5] : memref<16x256xf32, #tpu.memory_space<vmem>>, vector<16x256xf32>
    tpu.vector_store %arg3[%c0_4, %c0_5], %13 {strides = array<i32>} : memref<16x256xf32, #tpu.memory_space<vmem>>, vector<16x256xf32>,
    return
  }
  func.func @transform_0(%arg0: i32) -> (i32, i32) {
    %c0_i32 = arith.constant 0 : i32
    %c0_i32_0 = arith.constant 0 : i32
    return %arg0, %c0_i32 : i32, i32
  }
  func.func @transform_1(%arg0: i32) -> (i32, i32) {
    %c0_i32 = arith.constant 0 : i32
    %c0_i32_0 = arith.constant 0 : i32
    %c0_i32_1 = arith.constant 0 : i32
    return %c0_i32, %c0_i32_0 : i32, i32
  }
  func.func @transform_2(%arg0: i32) -> (i32, i32) {
    %c0_i32 = arith.constant 0 : i32
    %c0_i32_0 = arith.constant 0 : i32
    return %arg0, %c0_i32 : i32, i32
  }
}

</mosaic_0001>

<llo_original>
// kernel: tpu_custom_call.1
$region0: #{tpu_custom_call.1}
  #allocation0 [shape = 'u32[]', space=smem, size = 0x4, offset = 0x4, fixed_abs, tag = 'smem constant byte address 0x4 - core index']
  #allocation1 [shape = 'u32[144,128]{1,0:T(1,128)}', space=vmem, size = 0x12000, scoped, tag = 'internal scratch']
  %s0 = inlined_call_operand.vmem [shape: s32[16,1], index: 0, kind: input, shape index: {}]
  %s1 = inlined_call_operand.hbm [shape: f32[64,256], index: 1, kind: input, shape index: {}]
  %s2 = inlined_call_operand.hbm [shape: f32[16,256], index: 2, kind: output, shape index: {}]
  %s3 = sld [smem:[#allocation0]]
  $region22: #{tpu_custom_call.1} parent=0
    _
  %s5 = ssub.s32 1, %s3
  %s6 = scalar_select 0, %s5, %s3
  $region1: #{tpu_custom_call.1} parent=0
    #allocation2 [shape = 'u8[65536]{0}', space=vmem, size = 0x10000, scoped, tag = 'input window, operand 1, single buffered']
    #allocation3 [shape = 's32[1]{0}', space=sflag, size = 0x4, scoped, tag = 'scoped memory for tpu_custom_call.1']
    #allocation4 [shape = 's32[1]{0}', space=sflag, size = 0x4, scoped, tag = 'scoped memory for tpu_custom_call.1']
    #allocation5 [shape = 'u8[16384]{0}', space=vmem, size = 0x4000, scoped, tag = 'output window, operand 0, single buffered']
    %7 = vsyncpa [#allocation3], 0
    %8 = vsyncpa [#allocation4], 0
    // Predicated region
    $region2: #{tpu_custom_call.1} parent=1 // pred_check
      _
    $region3: #{tpu_custom_call.1} parent=1 // pred_check_branch
      %10 = sbr.rel (0) target = $region5
    $region4: #{tpu_custom_call.1} parent=1 // pred_region
      _
    $region5: #{tpu_custom_call.1} parent=1 // pred_fallthru
      _
    // Predicated region
    $region6: #{tpu_custom_call.1} parent=1 // pred_check
      _
    $region7: #{tpu_custom_call.1} parent=1 // pred_check_branch
      %12 = sbr.rel (0) target = $region9
    $region8: #{tpu_custom_call.1} parent=1 // pred_region
      %s14 = ssub.s32 2048, 2048
      %15 = vsyncadd [#allocation3], %s14
      %s16 = sshll.u32 [#allocation2], 4
      %s17 = int_to_ptr.vmem [resolvable:$true] %s16
      %22 = dma.hbm_to_vmem [thread:$0]  %s1, 2048, %s17, [#allocation3], 256, 256, 16
    $region9: #{tpu_custom_call.1} parent=1 // pred_fallthru
      _
    // Predicated region
    $region10: #{tpu_custom_call.1} parent=1 // pred_check
      _
    $region11: #{tpu_custom_call.1} parent=1 // pred_check_branch
      %24 = sbr.rel (0) target = $region13
    $region12: #{tpu_custom_call.1} parent=1 // pred_region
      %25 = dma.done [#allocation3], 2048
    $region13: #{tpu_custom_call.1} parent=1 // pred_fallthru
      _
    %v26 = vld [vmem:[%s0] sm:$0xff]
    %v27 = vld [vmem:[%s0 + $0x8] sm:$0xff]
    %vm28 = vcmp.gt.s32.totalorder %v26, 0
    %v29 = vsel %vm28, %v26, 0
    %vm30 = vcmp.gt.s32.totalorder %v27, 0
    %v31 = vsel %vm30, %v27, 0
    %vm32 = vcmp.lt.s32.totalorder %v29, 63
    %v33 = vsel %vm32, %v29, 63
    %vm34 = vcmp.lt.s32.totalorder %v31, 63
    %v35 = vsel %vm34, %v31, 63
    %v36 = vlaneseq
    %v37 = vand.u32 %v36, 127
    %38 = vset.pattern.permute.xlu0 0
    %39 = vperm.xlu0 %38, %v33
    %v40 = vpop.permute.xlu0 %39
    %41 = vset.pattern.permute.xlu0 0
    %42 = vperm.xlu0 %41, %v35
    %v43 = vpop.permute.xlu0 %42
    %vm44 = vcmp.eq.s32.totalorder %v40, %v37
    %vm45 = vcmp.eq.s32.totalorder %v43, %v37
    %v46 = vsel %vm44, 1, 0
    %v47 = vsel %vm45, 1, 0
    %v48 = vcvt.s32.f32 %v46
    %v49 = vcvt.s32.f32 %v47
    %v50 = vld [vmem:[#allocation2] sm:$0xff]
    %v51 = vld [vmem:[#allocation2 + $0x8] sm:$0xff]
    %v52 = vld [vmem:[#allocation2 + $0x10] sm:$0xff]
    %v53 = vld [vmem:[#allocation2 + $0x18] sm:$0xff]
    %v54 = vld [vmem:[#allocation2 + $0x20] sm:$0xff]
    %v55 = vld [vmem:[#allocation2 + $0x28] sm:$0xff]
    %v56 = vld [vmem:[#allocation2 + $0x30] sm:$0xff]
    %v57 = vld [vmem:[#allocation2 + $0x38] sm:$0xff]
    %v58 = vld [vmem:[#allocation2 + $0x40] sm:$0xff]
    %v59 = vld [vmem:[#allocation2 + $0x48] sm:$0xff]
    %v60 = vld [vmem:[#allocation2 + $0x50] sm:$0xff]
    %v61 = vld [vmem:[#allocation2 + $0x58] sm:$0xff]
    %v62 = vld [vmem:[#allocation2 + $0x60] sm:$0xff]
    %v63 = vld [vmem:[#allocation2 + $0x68] sm:$0xff]
    %v64 = vld [vmem:[#allocation2 + $0x70] sm:$0xff]
    %v65 = vld [vmem:[#allocation2 + $0x78] sm:$0xff]
    %vm66 = vcmask 523264
    %v68 = vsel %vm66, %v48, 0
    %v71 = vsel %vm66, %v49, 0
    %73 = vmatprep.subr.mxu0 %v51
    %74 = vmatpush1.msra.mxu0 %v50
    %75 = vmatprep.subr.mxu0 %v53
    %76 = vmatpush1.msra.mxu0 %v52
    %77 = vmatprep.subr.mxu0 %v55
    %78 = vmatpush1.msra.mxu0 %v54
    %79 = vmatprep.subr.mxu0 %v57
    %80 = vmatpush1.msra.mxu0 %v56
    %81 = vmatprep.subr.mxu0 %v59
    %82 = vmatpush1.msra.mxu0 %v58
    %83 = vmatprep.subr.mxu0 %v61
    %84 = vmatpush1.msra.mxu0 %v60
    %85 = vmatprep.subr.mxu0 %v63
    %86 = vmatpush1.msra.mxu0 %v62
    %87 = vmatprep.subr.mxu0 %v65
    %88 = vmatpush1.msra.mxu0 %v64
    %89 = vmatprep.subr.mxu0 0.0
    %90 = vmatpush1.msra.mxu0 0.0
    %91 = vmatprep.subr.mxu0 0.0
    %92 = vmatpush1.msra.mxu0 0.0
    %93 = vmatprep.subr.mxu0 0.0
    %94 = vmatpush1.msra.mxu0 0.0
    %95 = vmatprep.subr.mxu0 0.0
    %96 = vmatpush1.msra.mxu0 0.0
    %97 = vmatprep.subr.mxu0 0.0
    %98 = vmatpush1.msra.mxu0 0.0
    %99 = vmatprep.subr.mxu0 0.0
    %100 = vmatpush1.msra.mxu0 0.0
    %101 = vmatprep.subr.mxu0 0.0
    %102 = vmatpush1.msra.mxu0 0.0
    %103 = vmatprep.subr.mxu0 0.0
    %104 = vmatpush1.msra.mxu0 0.0
    %105 = vmatprep.subr.mxu0 0.0
    %106 = vmatpush1.msra.mxu0 0.0
    %107 = vmatprep.subr.mxu0 0.0
    %108 = vmatpush1.msra.mxu0 0.0
    %109 = vmatprep.subr.mxu0 0.0
    %110 = vmatpush1.msra.mxu0 0.0
    %111 = vmatprep.subr.mxu0 0.0
    %112 = vmatpush1.msra.mxu0 0.0
    %113 = vmatprep.subr.mxu0 0.0
    %114 = vmatpush1.msra.mxu0 0.0
    %115 = vmatprep.subr.mxu0 0.0
    %116 = vmatpush1.msra.mxu0 0.0
    %117 = vmatprep.subr.mxu0 0.0
    %118 = vmatpush1.msra.mxu0 0.0
    %119 = vmatprep.subr.mxu0 0.0
    %120 = vmatpush1.msra.mxu0 0.0
    %121 = vmatprep.subr.mxu0 0.0
    %122 = vmatpush1.msra.mxu0 0.0
    %123 = vmatprep.subr.mxu0 0.0
    %124 = vmatpush1.msra.mxu0 0.0
    %125 = vmatprep.subr.mxu0 0.0
    %126 = vmatpush1.msra.mxu0 0.0
    %127 = vmatprep.subr.mxu0 0.0
    %128 = vmatpush1.msra.mxu0 0.0
    %129 = vmatprep.subr.mxu0 0.0
    %130 = vmatpush1.msra.mxu0 0.0
    %131 = vmatprep.subr.mxu0 0.0
    %132 = vmatpush1.msra.mxu0 0.0
    %133 = vmatprep.subr.mxu0 0.0
    %134 = vmatpush1.msra.mxu0 0.0
    %135 = vmatprep.subr.mxu0 0.0
    %136 = vmatpush1.msra.mxu0 0.0
    %137 = vmatprep.mubr.f32.mxu0 0.0
    %138 = vmatmul.mubr.f32.gmra.mrb[0].mxu0 %v68
    %v139 = vpop.f32.mrb[0].mxu0
    %v140 = vadd.f32 0.0, %v139
    %v141 = vpop.f32.mrb[0].mxu0
    %v142 = vadd.f32 0.0, %v141
    %143 = vmatprep.mubr.f32.mxu0 0.0
    %144 = vmatmul.mubr.f32.gmra.mrb[0].mxu0 %v71
    %v145 = vpop.f32.mrb[0].mxu0
    %v146 = vadd.f32 0.0, %v145
    %v147 = vpop.f32.mrb[0].mxu0
    %v148 = vadd.f32 0.0, %v147
    %149 = vdwg.mxu0
    %v150 = vmul.f32 %v140, 16.0
    %v151 = vmul.f32 %v142, 16.0
    %v152 = vmul.f32 %v146, 16.0
    %v153 = vmul.f32 %v148, 16.0
    %154 = vst [vmem:[#allocation5] sm:$0xff] %v150
    %155 = vst [vmem:[#allocation5 + $0x8] sm:$0xff] %v151
    %156 = vst [vmem:[#allocation5 + $0x10] sm:$0xff] %v152
    %157 = vst [vmem:[#allocation5 + $0x18] sm:$0xff] %v153
    // Predicated region
    $region14: #{tpu_custom_call.1} parent=1 // pred_check
      _
    $region15: #{tpu_custom_call.1} parent=1 // pred_check_branch
      %159 = sbr.rel (0) target = $region17
    $region16: #{tpu_custom_call.1} parent=1 // pred_region
      %s161 = ssub.s32 512, 512
      %162 = vsyncadd [#allocation4], %s161
      %s163 = sshll.u32 [#allocation5], 4
      %s164 = int_to_ptr.vmem [resolvable:$true] %s163
      %169 = dma.vmem_to_hbm [thread:$0]  %s164, 512, %s2, [#allocation4], 256, 256, 16
    $region17: #{tpu_custom_call.1} parent=1 // pred_fallthru
      _
    // Predicated region
    $region18: #{tpu_custom_call.1} parent=1 // pred_check
      _
    $region19: #{tpu_custom_call.1} parent=1 // pred_check_branch
      %171 = sbr.rel (0) target = $region21
    $region20: #{tpu_custom_call.1} parent=1 // pred_region
      %172 = dma.done [#allocation4], 512
    $region21: #{tpu_custom_call.1} parent=1 // pred_fallthru
      _
    %173 = vsyncpa [#allocation3], 1
    %174 = vsyncpa [#allocation4], 1

</llo_original>
